<compile_context>
chip_gen: v7x
topology: tpu7x:2x2x1
jax: 0.10.0
libtpu: 0.0.40
codegen_flags: <defaults>
</compile_context>

<pallas_src>
import functools

import jax
import jax.numpy as jnp
from jax.experimental import pallas as pl
from jax.experimental.pallas import tpu as pltpu

KERNEL_MUL = 2.0   # defaults of the Gaussian multi-kernel MMD transfer loss
KERNEL_NUM = 5

LANE = 128
SUB = 8
VMEM_LIMIT = 32 * 1024 * 1024   # safe on v5e/v6e/v7x (re-derived for 64 MiB v7x)


def _round_up(x, m):
    return (x + m - 1) // m * m


def _pad2(a, rows, cols):
    r, c = a.shape
    return jnp.pad(a, ((0, rows - r), (0, cols - c)))


# ---------------------------------------------------------------------------
# Kernel 1: fused backbone-head (GAP done in wrapper) on the concatenated
#           source+target batch:
#             base Linear -> bottleneck Linear+ReLU -> classifier Linear
#           plus fused cross-entropy partial sums (source rows only).
# ---------------------------------------------------------------------------
def _feature_ce_kernel(pooled_ref, onehot_ref, w_base_ref, b_base_ref,
                       w_bot_ref, b_bot_ref, w_clf_ref, b_clf_ref,
                       feat_ref, ce_ref, *, num_class):
    x = pooled_ref[...]                                        # (tb, C) bf16
    base = jnp.dot(x, w_base_ref[...],
                   preferred_element_type=jnp.float32) + b_base_ref[...]
    # bottleneck_layer = Linear + ReLU   (bf16 operands, f32 accumulation)
    bot = jnp.dot(base.astype(jnp.bfloat16), w_bot_ref[...],
                  preferred_element_type=jnp.float32) + b_bot_ref[...]
    bot = jnp.maximum(bot, 0.0)                                # (tb, Dbot_p) f32
    feat_ref[...] = bot
    # classifier_layer = Linear
    logits = jnp.dot(bot.astype(jnp.bfloat16), w_clf_ref[...],
                     preferred_element_type=jnp.float32) + b_clf_ref[...]
    # mask padded class columns so the log-sum-exp only covers real classes
    col = jax.lax.broadcasted_iota(jnp.int32, logits.shape, 1)
    logits = jnp.where(col < num_class, logits, jnp.float32(-1e30))
    # cross-entropy (rows whose one-hot is all-zero — target / padding rows —
    # contribute exactly 0 to the partial sum)
    m = jnp.max(logits, axis=-1, keepdims=True)
    z = logits - m
    lse = jnp.log(jnp.sum(jnp.exp(z), axis=-1, keepdims=True))
    logp = z - lse
    nll = -jnp.sum(onehot_ref[...] * logp, axis=-1, keepdims=True)   # (tb, 1)
    partial = jnp.sum(nll, axis=0, keepdims=True)                    # (1, 1)
    ce_ref[...] = jnp.broadcast_to(partial[None], ce_ref.shape)      # (1,8,128)


# ---------------------------------------------------------------------------
# Kernel 2: Gaussian multi-kernel MMD via the Gram-matrix identity.
# ---------------------------------------------------------------------------
def _mmd_kernel(total_ref, loss_ref, *, batch):
    x = total_ref[...]                                    # (n, D) f32
    n = x.shape[0]
    b = batch
    # Gram matrix on the MXU (single matmul), f32 accumulation.
    gram = jax.lax.dot_general(x, x, (((1,), (1,)), ((), ())),
                               preferred_element_type=jnp.float32)   # (n, n)
    ri = jax.lax.broadcasted_iota(jnp.int32, gram.shape, 0)
    ci = jax.lax.broadcasted_iota(jnp.int32, gram.shape, 1)
    diag = jnp.where(ri == ci, gram, 0.0)
    r_col = jnp.sum(diag, axis=1, keepdims=True)          # (n, 1): ||x_i||^2
    r_row = jnp.sum(diag, axis=0, keepdims=True)          # (1, n): ||x_j||^2
    l2 = jnp.maximum(r_col + r_row - 2.0 * gram, 0.0)     # clamp cancellation
    # bandwidth = sum(L2) / (n^2 - n), scaled by kernel_mul**(kernel_num//2)
    row = jnp.sum(l2, axis=-1, keepdims=True)             # (n, 1)
    tot = jnp.sum(row, axis=0, keepdims=True)             # (1, 1)
    bandwidth = tot / float(n * n - n)
    bandwidth = bandwidth / (KERNEL_MUL ** (KERNEL_NUM // 2)) + 1e-12
    inv_bw = pl.reciprocal(bandwidth, approx=True)        # (1, 1), EUP
    kern = jnp.zeros_like(l2)
    for i in range(KERNEL_NUM):
        factor = -(KERNEL_MUL ** (-i))                    # python float
        kern = kern + jnp.exp(l2 * (inv_bw * factor))     # exp on EUP
    # +1 on SS / TT blocks, -1 on the cross blocks (generated in-kernel).
    sign = jnp.where((ri < b) == (ci < b), 1.0, -1.0)
    weighted = kern * sign
    wrow = jnp.sum(weighted, axis=-1, keepdims=True)      # (n, 1)
    loss_ref[...] = jnp.sum(wrow, axis=0, keepdims=True) / float(b * b)


def mmd_loss(total_feat, batch):
    loss = pl.pallas_call(
        functools.partial(_mmd_kernel, batch=batch),
        out_shape=jax.ShapeDtypeStruct((1, 1), jnp.float32),
        in_specs=[pl.BlockSpec(memory_space=pltpu.MemorySpace.VMEM)],
        out_specs=pl.BlockSpec(memory_space=pltpu.MemorySpace.VMEM),
        compiler_params=pltpu.CompilerParams(vmem_limit_bytes=VMEM_LIMIT),
    )(total_feat)
    return loss[0, 0]


# ---------------------------------------------------------------------------
# Parameter handling: logical (unpadded) params -> lane-padded bf16/f32 params.
# Padded columns/rows are zero, so logits and bottleneck features are
# numerically identical to the unpadded model.
# ---------------------------------------------------------------------------
def init_params(key, in_channels, base_dim, bottleneck_width, num_class):
    ks = jax.random.split(key, 6)
    return {
        "w_base": 0.1 * jax.random.normal(ks[0], (in_channels, base_dim), jnp.float32),
        "b_base": 0.1 * jax.random.normal(ks[1], (1, base_dim), jnp.float32),
        "w_bot":  0.1 * jax.random.normal(ks[2], (base_dim, bottleneck_width), jnp.float32),
        "b_bot":  0.1 * jax.random.normal(ks[3], (1, bottleneck_width), jnp.float32),
        "w_clf":  0.1 * jax.random.normal(ks[4], (bottleneck_width, num_class), jnp.float32),
        "b_clf":  0.1 * jax.random.normal(ks[5], (1, num_class), jnp.float32),
    }


def prepare_params(params):
    c, d_base = params["w_base"].shape
    d_bot = params["w_bot"].shape[1]
    n_cls = params["w_clf"].shape[1]
    d_base_p = _round_up(d_base, LANE)
    d_bot_p = _round_up(d_bot, LANE)
    n_cls_p = _round_up(n_cls, LANE)
    return {
        "w_base": _pad2(params["w_base"], c, d_base_p).astype(jnp.bfloat16),
        "b_base": _pad2(params["b_base"], 1, d_base_p).astype(jnp.float32),
        "w_bot":  _pad2(params["w_bot"], d_base_p, d_bot_p).astype(jnp.bfloat16),
        "b_bot":  _pad2(params["b_bot"], 1, d_bot_p).astype(jnp.float32),
        "w_clf":  _pad2(params["w_clf"], d_bot_p, n_cls_p).astype(jnp.bfloat16),
        "b_clf":  _pad2(params["b_clf"], 1, n_cls_p).astype(jnp.float32),
        "num_class": n_cls,
    }


# ---------------------------------------------------------------------------
# TransferNet.forward equivalent (transfer_loss='mmd', use_bottleneck=True).
# ---------------------------------------------------------------------------
def transfer_net_forward(source, target, source_label, prepared):
    B = source.shape[0]
    num_class = prepared["num_class"]
    n_cls_p = prepared["w_clf"].shape[1]
    d_bot_p = prepared["w_bot"].shape[1]

    total_img = jnp.concatenate([source, target], axis=0)        # (2B, C, H, W)
    n, C = total_img.shape[0], total_img.shape[1]
    # synthetic backbone part 1: global average pool (outside the kernel,
    # native dtype — no upcast of the large image tensor).
    pooled = jnp.mean(total_img.reshape(n, C, -1), axis=-1)      # (2B, C)

    # batch tiling: big lane-/sublane-aligned tiles, grid marked "parallel".
    tile_b = 256 if n >= 256 else _round_up(n, SUB)
    rows_pad = _round_up(n, tile_b)
    nblocks = rows_pad // tile_b

    pooled = jnp.pad(pooled, ((0, rows_pad - n), (0, 0))).astype(jnp.bfloat16)
    onehot = jax.nn.one_hot(source_label, n_cls_p, dtype=jnp.float32)  # (B, Kp)
    onehot = jnp.pad(onehot, ((0, rows_pad - B), (0, 0)))        # target+pad rows = 0

    feat, ce_part = pl.pallas_call(
        functools.partial(_feature_ce_kernel, num_class=num_class),
        grid=(nblocks,),
        in_specs=[
            pl.BlockSpec((tile_b, C), lambda i: (i, 0)),
            pl.BlockSpec((tile_b, n_cls_p), lambda i: (i, 0)),
            pl.BlockSpec(prepared["w_base"].shape, lambda i: (0, 0)),
            pl.BlockSpec(prepared["b_base"].shape, lambda i: (0, 0)),
            pl.BlockSpec(prepared["w_bot"].shape, lambda i: (0, 0)),
            pl.BlockSpec(prepared["b_bot"].shape, lambda i: (0, 0)),
            pl.BlockSpec(prepared["w_clf"].shape, lambda i: (0, 0)),
            pl.BlockSpec(prepared["b_clf"].shape, lambda i: (0, 0)),
        ],
        out_specs=(
            pl.BlockSpec((tile_b, d_bot_p), lambda i: (i, 0)),
            pl.BlockSpec((1, SUB, LANE), lambda i: (i, 0, 0)),
        ),
        out_shape=(
            jax.ShapeDtypeStruct((rows_pad, d_bot_p), jnp.float32),
            jax.ShapeDtypeStruct((nblocks, SUB, LANE), jnp.float32),
        ),
        compiler_params=pltpu.CompilerParams(
            dimension_semantics=("parallel",),
            vmem_limit_bytes=VMEM_LIMIT),
    )(pooled, onehot, prepared["w_base"], prepared["b_base"],
      prepared["w_bot"], prepared["b_bot"], prepared["w_clf"], prepared["b_clf"])

    # cross-entropy (mean over the B source rows); logits never left VMEM.
    clf_loss = jnp.sum(ce_part[:, 0, 0]) / float(B)
    # MMD on the real 2B rows (padded bottleneck columns are exactly zero).
    transfer = mmd_loss(feat[:n], B)
    return clf_loss, transfer


if __name__ == "__main__":
    key = jax.random.PRNGKey(0)
    k_src, k_tgt, k_lbl, k_par = jax.random.split(key, 4)

    B, C, H, W = 4, 4, 8, 8          # NCHW, small synthetic shapes
    base_dim, bottleneck_width, num_class = 64, 32, 8

    source = jax.random.normal(k_src, (B, C, H, W), jnp.float32)
    target = jax.random.normal(k_tgt, (B, C, H, W), jnp.float32)
    source_label = jax.random.randint(k_lbl, (B,), 0, num_class)

    params = init_params(k_par, C, base_dim, bottleneck_width, num_class)
    prepared = prepare_params(params)

    clf_loss, transfer_loss = transfer_net_forward(source, target, source_label, prepared)
    jax.block_until_ready((clf_loss, transfer_loss))
    print("KERNEL_OK")
</pallas_src>

<mosaic_0001>
module attributes {stable_mosaic.version = 11 : i64} {
  func.func @_feature_ce_kernel(%arg0: i32, %arg1: memref<8x4xbf16, #tpu.memory_space<vmem>>, %arg2: memref<8x128xf32, #tpu.memory_space<vmem>>, %arg3: memref<4x128xbf16, #tpu.memory_space<vmem>>, %arg4: memref<1x128xf32, #tpu.memory_space<vmem>>, %arg5: memref<128x128xbf16, #tpu.memory_space<vmem>>, %arg6: memref<1x128xf32, #tpu.memory_space<vmem>>, %arg7: memref<128x128xbf16, #tpu.memory_space<vmem>>, %arg8: memref<1x128xf32, #tpu.memory_space<vmem>>, %arg9: memref<8x128xf32, #tpu.memory_space<vmem>>, %arg10: memref<1x8x128xf32, #tpu.memory_space<vmem>>) attributes {dimension_semantics = [#tpu.dimension_semantics<parallel>], iteration_bounds = array<i64: 1>, scalar_prefetch = 0 : i64, scratch_operands = 0 : i64, tpu.core_type = #tpu.core_type<tc>, window_params = [{transform_indices = @transform_0, window_bounds = array<i64: 8, 4>}, {transform_indices = @transform_1, window_bounds = array<i64: 8, 128>}, {pipeline_mode = #tpu.pipeline_mode<synchronous>, transform_indices = @transform_2, window_bounds = array<i64: 4, 128>}, {pipeline_mode = #tpu.pipeline_mode<synchronous>, transform_indices = @transform_3, window_bounds = array<i64: 1, 128>}, {pipeline_mode = #tpu.pipeline_mode<synchronous>, transform_indices = @transform_4, window_bounds = array<i64: 128, 128>}, {pipeline_mode = #tpu.pipeline_mode<synchronous>, transform_indices = @transform_5, window_bounds = array<i64: 1, 128>}, {pipeline_mode = #tpu.pipeline_mode<synchronous>, transform_indices = @transform_6, window_bounds = array<i64: 128, 128>}, {pipeline_mode = #tpu.pipeline_mode<synchronous>, transform_indices = @transform_7, window_bounds = array<i64: 1, 128>}, {transform_indices = @transform_8, window_bounds = array<i64: 8, 128>}, {transform_indices = @transform_9, window_bounds = array<i64: 1, 8, 128>}]} {
    %c0 = arith.constant 0 : index
    %c0_0 = arith.constant 0 : index
    %0 = vector.load %arg1[%c0, %c0_0] : memref<8x4xbf16, #tpu.memory_space<vmem>>, vector<8x4xbf16>
    %c0_1 = arith.constant 0 : index
    %c0_2 = arith.constant 0 : index
    %1 = vector.load %arg3[%c0_1, %c0_2] : memref<4x128xbf16, #tpu.memory_space<vmem>>, vector<4x128xbf16>
    %cst = arith.constant dense<0.000000e+00> : vector<8x128xf32>
    %2 = tpu.matmul %0, %1, %cst {dimension_numbers = #tpu.dot_dimension_numbers<[1], [0], [0], [1], [0, 0, 1, 1], [], []>} : vector<8x4xbf16>, vector<4x128xbf16>, vector<8x128xf32> -> vector<8x128xf32>
    %c0_3 = arith.constant 0 : index
    %c0_4 = arith.constant 0 : index
    %3 = vector.load %arg4[%c0_3, %c0_4] : memref<1x128xf32, #tpu.memory_space<vmem>>, vector<1x128xf32>
    %4 = vector.broadcast %3 : vector<1x128xf32> to vector<8x128xf32>
    %5 = arith.addf %2, %4 : vector<8x128xf32>
    %6 = arith.truncf %5 : vector<8x128xf32> to vector<8x128xbf16>
    %c0_5 = arith.constant 0 : index
    %c0_6 = arith.constant 0 : index
    %7 = vector.load %arg5[%c0_5, %c0_6] : memref<128x128xbf16, #tpu.memory_space<vmem>>, vector<128x128xbf16>
    %cst_7 = arith.constant dense<0.000000e+00> : vector<8x128xf32>
    %8 = tpu.matmul %6, %7, %cst_7 {dimension_numbers = #tpu.dot_dimension_numbers<[1], [0], [0], [1], [0, 0, 1, 1], [], []>} : vector<8x128xbf16>, vector<128x128xbf16>, vector<8x128xf32> -> vector<8x128xf32>
    %c0_8 = arith.constant 0 : index
    %c0_9 = arith.constant 0 : index
    %9 = vector.load %arg6[%c0_8, %c0_9] : memref<1x128xf32, #tpu.memory_space<vmem>>, vector<1x128xf32>
    %10 = vector.broadcast %9 : vector<1x128xf32> to vector<8x128xf32>
    %11 = arith.addf %8, %10 : vector<8x128xf32>
    %cst_10 = arith.constant 0.000000e+00 : f32
    %12 = vector.broadcast %cst_10 : f32 to vector<8x128xf32>
    %13 = arith.maximumf %11, %12 : vector<8x128xf32>
    %c0_11 = arith.constant 0 : index
    %c0_12 = arith.constant 0 : index
    %14 = vector.load %arg9[%c0_11, %c0_12] : memref<8x128xf32, #tpu.memory_space<vmem>>, vector<8x128xf32>
    tpu.vector_store %arg9[%c0_11, %c0_12], %13 {strides = array<i32>} : memref<8x128xf32, #tpu.memory_space<vmem>>, vector<8x128xf32>,
    %15 = arith.truncf %13 : vector<8x128xf32> to vector<8x128xbf16>
    %c0_13 = arith.constant 0 : index
    %c0_14 = arith.constant 0 : index
    %16 = vector.load %arg7[%c0_13, %c0_14] : memref<128x128xbf16, #tpu.memory_space<vmem>>, vector<128x128xbf16>
    %cst_15 = arith.constant dense<0.000000e+00> : vector<8x128xf32>
    %17 = tpu.matmul %15, %16, %cst_15 {dimension_numbers = #tpu.dot_dimension_numbers<[1], [0], [0], [1], [0, 0, 1, 1], [], []>} : vector<8x128xbf16>, vector<128x128xbf16>, vector<8x128xf32> -> vector<8x128xf32>
    %c0_16 = arith.constant 0 : index
    %c0_17 = arith.constant 0 : index
    %18 = vector.load %arg8[%c0_16, %c0_17] : memref<1x128xf32, #tpu.memory_space<vmem>>, vector<1x128xf32>
    %19 = vector.broadcast %18 : vector<1x128xf32> to vector<8x128xf32>
    %20 = arith.addf %17, %19 : vector<8x128xf32>
    %21 = tpu.iota {dimensions = array<i32: 1>} : vector<8x128xi32>
    %c8_i32 = arith.constant 8 : i32
    %22 = vector.broadcast %c8_i32 : i32 to vector<8x128xi32>
    %23 = arith.cmpi slt, %21, %22 : vector<8x128xi32>
    %cst_18 = arith.constant -1.000000e+30 : f32
    %24 = vector.broadcast %cst_18 : f32 to vector<8x128xf32>
    %25 = arith.select %23, %20, %24 : vector<8x128xi1>, vector<8x128xf32>
    %cst_19 = arith.constant dense<0xFF800000> : vector<8xf32>
    %26 = vector.multi_reduction <maximumf>, %25, %cst_19 [1] : vector<8x128xf32> to vector<8xf32>
    %27 = vector.shape_cast %26 : vector<8xf32> to vector<8x1xf32>
    %28 = vector.broadcast %27 : vector<8x1xf32> to vector<8x128xf32>
    %29 = arith.subf %25, %28 : vector<8x128xf32>
    %30 = math.exp %29 : vector<8x128xf32>
    %cst_20 = arith.constant dense<0.000000e+00> : vector<8xf32>
    %31 = vector.multi_reduction <add>, %30, %cst_20 [1] : vector<8x128xf32> to vector<8xf32>
    %32 = vector.shape_cast %31 : vector<8xf32> to vector<8x1xf32>
    %33 = math.log %32 : vector<8x1xf32>
    %34 = vector.broadcast %33 : vector<8x1xf32> to vector<8x128xf32>
    %35 = arith.subf %29, %34 : vector<8x128xf32>
    %c0_21 = arith.constant 0 : index
    %c0_22 = arith.constant 0 : index
    %36 = vector.load %arg2[%c0_21, %c0_22] : memref<8x128xf32, #tpu.memory_space<vmem>>, vector<8x128xf32>
    %37 = arith.mulf %36, %35 : vector<8x128xf32>
    %cst_23 = arith.constant dense<0.000000e+00> : vector<8xf32>
    %38 = vector.multi_reduction <add>, %37, %cst_23 [1] : vector<8x128xf32> to vector<8xf32>
    %39 = vector.shape_cast %38 : vector<8xf32> to vector<8x1xf32>
    %cst_24 = arith.constant 0.000000e+00 : f32
    %40 = vector.broadcast %cst_24 : f32 to vector<8x1xf32>
    %41 = arith.subf %40, %39 : vector<8x1xf32>
    %cst_25 = arith.constant dense<0.000000e+00> : vector<1xf32>
    %42 = vector.multi_reduction <add>, %41, %cst_25 [0] : vector<8x1xf32> to vector<1xf32>
    %43 = vector.shape_cast %42 : vector<1xf32> to vector<1x1xf32>
    %44 = vector.shape_cast %43 : vector<1x1xf32> to vector<1x1x1xf32>
    %45 = vector.shape_cast %44 : vector<1x1x1xf32> to vector<1x1x1xf32>
    %46 = vector.broadcast %45 : vector<1x1x1xf32> to vector<1x8x128xf32>
    %c0_26 = arith.constant 0 : index
    %c0_27 = arith.constant 0 : index
    %c0_28 = arith.constant 0 : index
    %47 = vector.load %arg10[%c0_26, %c0_27, %c0_28] : memref<1x8x128xf32, #tpu.memory_space<vmem>>, vector<1x8x128xf32>
    tpu.vector_store %arg10[%c0_26, %c0_27, %c0_28], %46 {strides = array<i32>} : memref<1x8x128xf32, #tpu.memory_space<vmem>>, vector<1x8x128xf32>,
    return
  }
  func.func @transform_0(%arg0: i32) -> (i32, i32) {
    %c0_i32 = arith.constant 0 : i32
    %c0_i32_0 = arith.constant 0 : i32
    return %arg0, %c0_i32 : i32, i32
  }
  func.func @transform_1(%arg0: i32) -> (i32, i32) {
    %c0_i32 = arith.constant 0 : i32
    %c0_i32_0 = arith.constant 0 : i32
    return %arg0, %c0_i32 : i32, i32
  }
  func.func @transform_2(%arg0: i32) -> (i32, i32) {
    %c0_i32 = arith.constant 0 : i32
    %c0_i32_0 = arith.constant 0 : i32
    %c0_i32_1 = arith.constant 0 : i32
    return %c0_i32, %c0_i32_0 : i32, i32
  }
  func.func @transform_3(%arg0: i32) -> (i32, i32) {
    %c0_i32 = arith.constant 0 : i32
    %c0_i32_0 = arith.constant 0 : i32
    %c0_i32_1 = arith.constant 0 : i32
    return %c0_i32, %c0_i32_0 : i32, i32
  }
  func.func @transform_4(%arg0: i32) -> (i32, i32) {
    %c0_i32 = arith.constant 0 : i32
    %c0_i32_0 = arith.constant 0 : i32
    %c0_i32_1 = arith.constant 0 : i32
    return %c0_i32, %c0_i32_0 : i32, i32
  }
  func.func @transform_5(%arg0: i32) -> (i32, i32) {
    %c0_i32 = arith.constant 0 : i32
    %c0_i32_0 = arith.constant 0 : i32
    %c0_i32_1 = arith.constant 0 : i32
    return %c0_i32, %c0_i32_0 : i32, i32
  }
  func.func @transform_6(%arg0: i32) -> (i32, i32) {
    %c0_i32 = arith.constant 0 : i32
    %c0_i32_0 = arith.constant 0 : i32
    %c0_i32_1 = arith.constant 0 : i32
    return %c0_i32, %c0_i32_0 : i32, i32
  }
  func.func @transform_7(%arg0: i32) -> (i32, i32) {
    %c0_i32 = arith.constant 0 : i32
    %c0_i32_0 = arith.constant 0 : i32
    %c0_i32_1 = arith.constant 0 : i32
    return %c0_i32, %c0_i32_0 : i32, i32
  }
  func.func @transform_8(%arg0: i32) -> (i32, i32) {
    %c0_i32 = arith.constant 0 : i32
    %c0_i32_0 = arith.constant 0 : i32
    return %arg0, %c0_i32 : i32, i32
  }
  func.func @transform_9(%arg0: i32) -> (i32, i32, i32) {
    %c0_i32 = arith.constant 0 : i32
    %c0_i32_0 = arith.constant 0 : i32
    %c0_i32_1 = arith.constant 0 : i32
    return %arg0, %c0_i32, %c0_i32_0 : i32, i32, i32
  }
}

</mosaic_0001>

<llo_original>
// kernel: tpu_custom_call.1
$region0: #{tpu_custom_call.1}
  #allocation0 [shape = 'u32[]', space=smem, size = 0x4, offset = 0x4, fixed_abs, tag = 'smem constant byte address 0x4 - core index']
  #allocation1 [shape = 'u32[144,128]{1,0:T(1,128)}', space=vmem, size = 0x12000, scoped, tag = 'internal scratch']
  %s0 = inlined_call_operand.vmem [shape: bf16[8,4], index: 0, kind: input, shape index: {}]
  %s1 = inlined_call_operand.vmem [shape: f32[8,128], index: 1, kind: input, shape index: {}]
  %s2 = inlined_call_operand.vmem [shape: bf16[4,128], index: 2, kind: input, shape index: {}]
  %s3 = inlined_call_operand.vmem [shape: f32[1,128], index: 3, kind: input, shape index: {}]
  %s4 = inlined_call_operand.hbm [shape: bf16[128,128], index: 4, kind: input, shape index: {}]
  %s5 = inlined_call_operand.vmem [shape: f32[1,128], index: 5, kind: input, shape index: {}]
  %s6 = inlined_call_operand.hbm [shape: bf16[128,128], index: 6, kind: input, shape index: {}]
  %s7 = inlined_call_operand.vmem [shape: f32[1,128], index: 7, kind: input, shape index: {}]
  %s8 = inlined_call_operand.hbm [shape: f32[8,128], index: 8, kind: output, shape index: {0}]
  %s9 = inlined_call_operand.hbm [shape: f32[1,8,128], index: 9, kind: output, shape index: {1}]
  %10 = xla_tuple %s8, %s9
  %s11 = sld [smem:[#allocation0]]
  $region58: #{tpu_custom_call.1} parent=0
    _
  %s13 = ssub.s32 1, %s11
  %s14 = scalar_select 0, %s13, %s11
  $region1: #{tpu_custom_call.1} parent=0
    #allocation2 [shape = 'u8[32768]{0}', space=vmem, size = 0x8000, scoped, tag = 'input window, operand 4, single buffered']
    #allocation3 [shape = 's32[1]{0}', space=sflag, size = 0x4, scoped, tag = 'scoped memory for tpu_custom_call.1']
    #allocation4 [shape = 's32[1]{0}', space=sflag, size = 0x4, scoped, tag = 'scoped memory for tpu_custom_call.1']
    #allocation5 [shape = 'u8[32768]{0}', space=vmem, size = 0x8000, scoped, tag = 'input window, operand 6, single buffered']
    #allocation6 [shape = 's32[1]{0}', space=sflag, size = 0x4, scoped, tag = 'scoped memory for tpu_custom_call.1']
    #allocation7 [shape = 'u8[4096]{0}', space=vmem, size = 0x1000, scoped, tag = 'output window, operand 0, single buffered']
    #allocation8 [shape = 'u8[4096]{0}', space=vmem, size = 0x1000, scoped, tag = 'output window, operand 1, single buffered']
    #allocation9 [shape = 's32[1]{0}', space=sflag, size = 0x4, scoped, tag = 'scoped memory for tpu_custom_call.1']
    %15 = vsyncpa [#allocation3], 0
    %16 = vsyncpa [#allocation6], 0
    %17 = vsyncpa [#allocation4], 0
    %18 = vsyncpa [#allocation9], 0
    // Predicated region
    $region2: #{tpu_custom_call.1} parent=1 // pred_check
      _
    $region3: #{tpu_custom_call.1} parent=1 // pred_check_branch
      %20 = sbr.rel (0) target = $region5
    $region4: #{tpu_custom_call.1} parent=1 // pred_region
      _
    $region5: #{tpu_custom_call.1} parent=1 // pred_fallthru
      _
    // Predicated region
    $region6: #{tpu_custom_call.1} parent=1 // pred_check
      _
    $region7: #{tpu_custom_call.1} parent=1 // pred_check_branch
      %22 = sbr.rel (0) target = $region9
    $region8: #{tpu_custom_call.1} parent=1 // pred_region
      _
    $region9: #{tpu_custom_call.1} parent=1 // pred_fallthru
      _
    // Predicated region
    $region10: #{tpu_custom_call.1} parent=1 // pred_check
      _
    $region11: #{tpu_custom_call.1} parent=1 // pred_check_branch
      %24 = sbr.rel (0) target = $region13
    $region12: #{tpu_custom_call.1} parent=1 // pred_region
      _
    $region13: #{tpu_custom_call.1} parent=1 // pred_fallthru
      _
    // Predicated region
    $region14: #{tpu_custom_call.1} parent=1 // pred_check
      _
    $region15: #{tpu_custom_call.1} parent=1 // pred_check_branch
      %26 = sbr.rel (0) target = $region17
    $region16: #{tpu_custom_call.1} parent=1 // pred_region
      _
    $region17: #{tpu_custom_call.1} parent=1 // pred_fallthru
      _
    // Predicated region
    $region18: #{tpu_custom_call.1} parent=1 // pred_check
      _
    $region19: #{tpu_custom_call.1} parent=1 // pred_check_branch
      %28 = sbr.rel (0) target = $region21
    $region20: #{tpu_custom_call.1} parent=1 // pred_region
      %s30 = ssub.s32 1024, 1024
      %31 = vsyncadd [#allocation3], %s30
      %s32 = sshll.u32 [#allocation2], 4
      %s33 = int_to_ptr.vmem [resolvable:$true] %s32
      %38 = dma.hbm_to_vmem [thread:$0]  %s4, 1024, %s33, [#allocation3], 64, 64, 4
    $region21: #{tpu_custom_call.1} parent=1 // pred_fallthru
      _
    // Predicated region
    $region22: #{tpu_custom_call.1} parent=1 // pred_check
      _
    $region23: #{tpu_custom_call.1} parent=1 // pred_check_branch
      %40 = sbr.rel (0) target = $region25
    $region24: #{tpu_custom_call.1} parent=1 // pred_region
      _
    $region25: #{tpu_custom_call.1} parent=1 // pred_fallthru
      _
    // Predicated region
    $region26: #{tpu_custom_call.1} parent=1 // pred_check
      _
    $region27: #{tpu_custom_call.1} parent=1 // pred_check_branch
      %42 = sbr.rel (0) target = $region29
    $region28: #{tpu_custom_call.1} parent=1 // pred_region
      %s44 = ssub.s32 1024, 1024
      %45 = vsyncadd [#allocation6], %s44
      %s46 = sshll.u32 [#allocation5], 4
      %s47 = int_to_ptr.vmem [resolvable:$true] %s46
      %52 = dma.hbm_to_vmem [thread:$0]  %s6, 1024, %s47, [#allocation6], 64, 64, 4
    $region29: #{tpu_custom_call.1} parent=1 // pred_fallthru
      _
    // Predicated region
    $region30: #{tpu_custom_call.1} parent=1 // pred_check
      _
    $region31: #{tpu_custom_call.1} parent=1 // pred_check_branch
      %54 = sbr.rel (0) target = $region33
    $region32: #{tpu_custom_call.1} parent=1 // pred_region
      _
    $region33: #{tpu_custom_call.1} parent=1 // pred_fallthru
      _
    // Predicated region
    $region34: #{tpu_custom_call.1} parent=1 // pred_check
      _
    $region35: #{tpu_custom_call.1} parent=1 // pred_check_branch
      %56 = sbr.rel (0) target = $region37
    $region36: #{tpu_custom_call.1} parent=1 // pred_region
      %57 = dma.done [#allocation3], 1024
    $region37: #{tpu_custom_call.1} parent=1 // pred_fallthru
      _
    // Predicated region
    $region38: #{tpu_custom_call.1} parent=1 // pred_check
      _
    $region39: #{tpu_custom_call.1} parent=1 // pred_check_branch
      %59 = sbr.rel (0) target = $region41
    $region40: #{tpu_custom_call.1} parent=1 // pred_region
      %60 = dma.done [#allocation6], 1024
    $region41: #{tpu_custom_call.1} parent=1 // pred_fallthru
      _
    %v62 = vld [vmem:[%s0] sm:$0xf]
    %v63 = vld [vmem:[%s2] sm:$0x3]
    %v64 = vld [vmem:[%s3] sm:$0x1]
    %v66 = vlaneseq
    %v67 = vshrl.u32 %v66, 7
    %v68 = vsub.s32 0, %v67
    %v69 = vrot.slane %v64, %v68
    %vm71 = vcmask 31744
    %v73 = vsel %vm71, %v62, 0
    %vm75 = vcmask 1041408
    %v77 = vsel %vm75, %v63, 0
    %79 = vmatprep.subr.bf16.mxu0 0
    %80 = vmatpush1.bf16.msra.mxu0 %v77
    %81 = vmatprep.subr.bf16.mxu0 0
    %82 = vmatpush1.bf16.msra.mxu0 0
    %83 = vmatprep.subr.bf16.mxu0 0
    %84 = vmatpush1.bf16.msra.mxu0 0
    %85 = vmatprep.subr.bf16.mxu0 0
    %86 = vmatpush1.bf16.msra.mxu0 0
    %87 = vmatprep.subr.bf16.mxu0 0
    %88 = vmatpush1.bf16.msra.mxu0 0
    %89 = vmatprep.subr.bf16.mxu0 0
    %90 = vmatpush1.bf16.msra.mxu0 0
    %91 = vmatprep.subr.bf16.mxu0 0
    %92 = vmatpush1.bf16.msra.mxu0 0
    %93 = vmatprep.subr.bf16.mxu0 0
    %94 = vmatpush1.bf16.msra.mxu0 0
    %95 = vmatprep.subr.bf16.mxu0 0
    %96 = vmatpush1.bf16.msra.mxu0 0
    %97 = vmatprep.subr.bf16.mxu0 0
    %98 = vmatpush1.bf16.msra.mxu0 0
    %99 = vmatprep.subr.bf16.mxu0 0
    %100 = vmatpush1.bf16.msra.mxu0 0
    %101 = vmatprep.subr.bf16.mxu0 0
    %102 = vmatpush1.bf16.msra.mxu0 0
    %103 = vmatprep.subr.bf16.mxu0 0
    %104 = vmatpush1.bf16.msra.mxu0 0
    %105 = vmatprep.subr.bf16.mxu0 0
    %106 = vmatpush1.bf16.msra.mxu0 0
    %107 = vmatprep.subr.bf16.mxu0 0
    %108 = vmatpush1.bf16.msra.mxu0 0
    %109 = vmatprep.subr.bf16.mxu0 0
    %110 = vmatpush1.bf16.msra.mxu0 0
    %111 = vmatprep.mubr.bf16.mxu0 0
    %112 = vmatmul.mubr.bf16.gmra.mrb[0].mxu0 %v73
    %v113 = vpop.f32.mrb[0].mxu0
    %v114 = vadd.f32 %v69, %v113
    %v115 = vpop.f32.mrb[0].mxu0
    %v116 = vpop.f32.mrb[0].mxu0
    %v117 = vpop.f32.mrb[0].mxu0
    %118 = vdwg.mxu0
    %v119 = vpack.c.bf16 %v114, %v114
    %v120 = vld [vmem:[#allocation2] sm:$0xf]
    %v121 = vld [vmem:[#allocation2 + $0x4] sm:$0xf]
    %v122 = vld [vmem:[#allocation2 + $0x8] sm:$0xf]
    %v123 = vld [vmem:[#allocation2 + $0xc] sm:$0xf]
    %v124 = vld [vmem:[#allocation2 + $0x10] sm:$0xf]
    %v125 = vld [vmem:[#allocation2 + $0x14] sm:$0xf]
    %v126 = vld [vmem:[#allocation2 + $0x18] sm:$0xf]
    %v127 = vld [vmem:[#allocation2 + $0x1c] sm:$0xf]
    %v128 = vld [vmem:[#allocation2 + $0x20] sm:$0xf]
    %v129 = vld [vmem:[#allocation2 + $0x24] sm:$0xf]
    %v130 = vld [vmem:[#allocation2 + $0x28] sm:$0xf]
    %v131 = vld [vmem:[#allocation2 + $0x2c] sm:$0xf]
    %v132 = vld [vmem:[#allocation2 + $0x30] sm:$0xf]
    %v133 = vld [vmem:[#allocation2 + $0x34] sm:$0xf]
    %v134 = vld [vmem:[#allocation2 + $0x38] sm:$0xf]
    %v135 = vld [vmem:[#allocation2 + $0x3c] sm:$0xf]
    %v136 = vld [vmem:[%s5] sm:$0x1]
    %v138 = vlaneseq
    %v139 = vshrl.u32 %v138, 7
    %v140 = vsub.s32 0, %v139
    %v141 = vrot.slane %v136, %v140
    %v159 = vunpack.c.l.b16 %v120
    %v160 = vunpack.c.l.b16 %v121
    %v161 = vunpack.c.l.b16 %v122
    %v162 = vunpack.c.l.b16 %v123
    %v163 = vunpack.c.l.b16 %v124
    %v164 = vunpack.c.l.b16 %v125
    %v165 = vunpack.c.l.b16 %v126
    %v166 = vunpack.c.l.b16 %v127
    %v167 = vunpack.c.l.b16 %v128
    %v168 = vunpack.c.l.b16 %v129
    %v169 = vunpack.c.l.b16 %v130
    %v170 = vunpack.c.l.b16 %v131
    %v171 = vunpack.c.l.b16 %v132
    %v172 = vunpack.c.l.b16 %v133
    %v173 = vunpack.c.l.b16 %v134
    %v174 = vunpack.c.l.b16 %v135
    %v175 = vpack.c.b16 %v160, %v159
    %v176 = vpack.c.b16 %v162, %v161
    %v177 = vpack.c.b16 %v164, %v163
    %v178 = vpack.c.b16 %v166, %v165
    %v179 = vpack.c.b16 %v168, %v167
    %v180 = vpack.c.b16 %v170, %v169
    %v181 = vpack.c.b16 %v172, %v171
    %v182 = vpack.c.b16 %v174, %v173
    %191 = vmatprep.subr.bf16.mxu0 0
    %192 = vmatpush1.bf16.msra.mxu0 %v175
    %193 = vmatprep.subr.bf16.mxu0 0
    %194 = vmatpush1.bf16.msra.mxu0 %v176
    %195 = vmatprep.subr.bf16.mxu0 0
    %196 = vmatpush1.bf16.msra.mxu0 %v177
    %197 = vmatprep.subr.bf16.mxu0 0
    %198 = vmatpush1.bf16.msra.mxu0 %v178
    %199 = vmatprep.subr.bf16.mxu0 0
    %200 = vmatpush1.bf16.msra.mxu0 %v179
    %201 = vmatprep.subr.bf16.mxu0 0
    %202 = vmatpush1.bf16.msra.mxu0 %v180
    %203 = vmatprep.subr.bf16.mxu0 0
    %204 = vmatpush1.bf16.msra.mxu0 %v181
    %205 = vmatprep.subr.bf16.mxu0 0
    %206 = vmatpush1.bf16.msra.mxu0 %v182
    %207 = vmatprep.subr.bf16.mxu0 0
    %208 = vmatpush1.bf16.msra.mxu0 0
    %209 = vmatprep.subr.bf16.mxu0 0
    %210 = vmatpush1.bf16.msra.mxu0 0
    %211 = vmatprep.subr.bf16.mxu0 0
    %212 = vmatpush1.bf16.msra.mxu0 0
    %213 = vmatprep.subr.bf16.mxu0 0
    %214 = vmatpush1.bf16.msra.mxu0 0
    %215 = vmatprep.subr.bf16.mxu0 0
    %216 = vmatpush1.bf16.msra.mxu0 0
    %217 = vmatprep.subr.bf16.mxu0 0
    %218 = vmatpush1.bf16.msra.mxu0 0
    %219 = vmatprep.subr.bf16.mxu0 0
    %220 = vmatpush1.bf16.msra.mxu0 0
    %221 = vmatprep.subr.bf16.mxu0 0
    %222 = vmatpush1.bf16.msra.mxu0 0
    %223 = vmatprep.mubr.bf16.mxu0 0
    %224 = vmatmul.mubr.bf16.gmra.mrb[0].mxu0 %v119
    %v225 = vpop.f32.mrb[0].mxu0
    %v226 = vadd.f32 %v141, %v225
    %v227 = vpop.f32.mrb[0].mxu0
    %v228 = vpop.f32.mrb[0].mxu0
    %v229 = vpop.f32.mrb[0].mxu0
    %230 = vdwg.mxu0
    %v231 = vmax.f32 %v226, 0.0
    %232 = vst [vmem:[#allocation7] sm:$0xff] %v231
    %v233 = vpack.c.bf16 %v231, %v231
    %v234 = vld [vmem:[#allocation5] sm:$0xf]
    %v235 = vld [vmem:[#allocation5 + $0x4] sm:$0xf]
    %v236 = vld [vmem:[#allocation5 + $0x8] sm:$0xf]
    %v237 = vld [vmem:[#allocation5 + $0xc] sm:$0xf]
    %v238 = vld [vmem:[#allocation5 + $0x10] sm:$0xf]
    %v239 = vld [vmem:[#allocation5 + $0x14] sm:$0xf]
    %v240 = vld [vmem:[#allocation5 + $0x18] sm:$0xf]
    %v241 = vld [vmem:[#allocation5 + $0x1c] sm:$0xf]
    %v242 = vld [vmem:[#allocation5 + $0x20] sm:$0xf]
    %v243 = vld [vmem:[#allocation5 + $0x24] sm:$0xf]
    %v244 = vld [vmem:[#allocation5 + $0x28] sm:$0xf]
    %v245 = vld [vmem:[#allocation5 + $0x2c] sm:$0xf]
    %v246 = vld [vmem:[#allocation5 + $0x30] sm:$0xf]
    %v247 = vld [vmem:[#allocation5 + $0x34] sm:$0xf]
    %v248 = vld [vmem:[#allocation5 + $0x38] sm:$0xf]
    %v249 = vld [vmem:[#allocation5 + $0x3c] sm:$0xf]
    %v250 = vld [vmem:[%s7] sm:$0x1]
    %v252 = vlaneseq
    %v253 = vshrl.u32 %v252, 7
    %v254 = vsub.s32 0, %v253
    %v255 = vrot.slane %v250, %v254
    %v273 = vunpack.c.l.b16 %v234
    %v274 = vunpack.c.l.b16 %v235
    %v275 = vunpack.c.l.b16 %v236
    %v276 = vunpack.c.l.b16 %v237
    %v277 = vunpack.c.l.b16 %v238
    %v278 = vunpack.c.l.b16 %v239
    %v279 = vunpack.c.l.b16 %v240
    %v280 = vunpack.c.l.b16 %v241
    %v281 = vunpack.c.l.b16 %v242
    %v282 = vunpack.c.l.b16 %v243
    %v283 = vunpack.c.l.b16 %v244
    %v284 = vunpack.c.l.b16 %v245
    %v285 = vunpack.c.l.b16 %v246
    %v286 = vunpack.c.l.b16 %v247
    %v287 = vunpack.c.l.b16 %v248
    %v288 = vunpack.c.l.b16 %v249
    %v289 = vpack.c.b16 %v274, %v273
    %v290 = vpack.c.b16 %v276, %v275
    %v291 = vpack.c.b16 %v278, %v277
    %v292 = vpack.c.b16 %v280, %v279
    %v293 = vpack.c.b16 %v282, %v281
    %v294 = vpack.c.b16 %v284, %v283
    %v295 = vpack.c.b16 %v286, %v285
    %v296 = vpack.c.b16 %v288, %v287
    %305 = vmatprep.subr.bf16.mxu0 0
    %306 = vmatpush1.bf16.msra.mxu0 %v289
    %307 = vmatprep.subr.bf16.mxu0 0
    %308 = vmatpush1.bf16.msra.mxu0 %v290
    %309 = vmatprep.subr.bf16.mxu0 0
    %310 = vmatpush1.bf16.msra.mxu0 %v291
    %311 = vmatprep.subr.bf16.mxu0 0
    %312 = vmatpush1.bf16.msra.mxu0 %v292
    %313 = vmatprep.subr.bf16.mxu0 0
    %314 = vmatpush1.bf16.msra.mxu0 %v293
    %315 = vmatprep.subr.bf16.mxu0 0
    %316 = vmatpush1.bf16.msra.mxu0 %v294
    %317 = vmatprep.subr.bf16.mxu0 0
    %318 = vmatpush1.bf16.msra.mxu0 %v295
    %319 = vmatprep.subr.bf16.mxu0 0
    %320 = vmatpush1.bf16.msra.mxu0 %v296
    %321 = vmatprep.subr.bf16.mxu0 0
    %322 = vmatpush1.bf16.msra.mxu0 0
    %323 = vmatprep.subr.bf16.mxu0 0
    %324 = vmatpush1.bf16.msra.mxu0 0
    %325 = vmatprep.subr.bf16.mxu0 0
    %326 = vmatpush1.bf16.msra.mxu0 0
    %327 = vmatprep.subr.bf16.mxu0 0
    %328 = vmatpush1.bf16.msra.mxu0 0
    %329 = vmatprep.subr.bf16.mxu0 0
    %330 = vmatpush1.bf16.msra.mxu0 0
    %331 = vmatprep.subr.bf16.mxu0 0
    %332 = vmatpush1.bf16.msra.mxu0 0
    %333 = vmatprep.subr.bf16.mxu0 0
    %334 = vmatpush1.bf16.msra.mxu0 0
    %335 = vmatprep.subr.bf16.mxu0 0
    %336 = vmatpush1.bf16.msra.mxu0 0
    %337 = vmatprep.mubr.bf16.mxu0 0
    %338 = vmatmul.mubr.bf16.gmra.mrb[0].mxu0 %v233
    %v339 = vpop.f32.mrb[0].mxu0
    %v340 = vadd.f32 %v255, %v339
    %v341 = vpop.f32.mrb[0].mxu0
    %v342 = vpop.f32.mrb[0].mxu0
    %v343 = vpop.f32.mrb[0].mxu0
    %344 = vdwg.mxu0
    %v345 = vlaneseq
    %v346 = vand.u32 %v345, 127
    %vm347 = vcmp.lt.s32.totalorder %v346, 8
    %v348 = vsel %vm347, %v340, -1e+30
    %349 = vmax.xlane.f32.xlu0 %v348
    %v350 = vpop.xlane.xlu0 %349
    %v351 = vsub.f32 %v348, %v350
    %v352 = vmul.f32 %v351, 1.442695
    %v353 = vpow.pop %v352
    %354 = vadd.xlane.f32.xlu0 %v353
    %v355 = vpop.xlane.xlu0 %354
    %v356 = vlog2.pop %v355
    %v357 = vmul.f32 %v356, 0.6931472
    %v358 = vsub.f32 %v351, %v357
    %v359 = vld [vmem:[%s1] sm:$0xff]
    %v360 = vmul.f32 %v359, %v358
    %361 = vadd.xlane.f32.xlu0 %v360
    %v362 = vpop.xlane.xlu0 %361
    %v363 = vsub.f32 0.0, %v362
    %v364 = vrot.slane %v363, 4
    %v365 = vadd.f32 %v363, %v364
    %v366 = vrot.slane %v365, 2
    %v367 = vadd.f32 %v365, %v366
    %v368 = vrot.slane %v367, 1
    %v369 = vadd.f32 %v367, %v368
    %370 = vst [vmem:[#allocation8] sm:$0xff] %v369
    // Predicated region
    $region42: #{tpu_custom_call.1} parent=1 // pred_check
      _
    $region43: #{tpu_custom_call.1} parent=1 // pred_check_branch
      %372 = sbr.rel (0) target = $region45
    $region44: #{tpu_custom_call.1} parent=1 // pred_region
      %s374 = ssub.s32 128, 128
      %375 = vsyncadd [#allocation4], %s374
      %s377 = sshll.u32 [#allocation7], 4
      %s378 = int_to_ptr.vmem [resolvable:$true] %s377
      %380 = dma.vmem_to_hbm [thread:$0]  %s378, 128, %s8, [#allocation4]
    $region45: #{tpu_custom_call.1} parent=1 // pred_fallthru
      _
    // Predicated region
    $region46: #{tpu_custom_call.1} parent=1 // pred_check
      _
    $region47: #{tpu_custom_call.1} parent=1 // pred_check_branch
      %382 = sbr.rel (0) target = $region49
    $region48: #{tpu_custom_call.1} parent=1 // pred_region
      %s384 = ssub.s32 128, 128
      %385 = vsyncadd [#allocation9], %s384
      %s387 = sshll.u32 [#allocation8], 4
      %s388 = int_to_ptr.vmem [resolvable:$true] %s387
      %390 = dma.vmem_to_hbm [thread:$0]  %s388, 128, %s9, [#allocation9]
    $region49: #{tpu_custom_call.1} parent=1 // pred_fallthru
      _
    // Predicated region
    $region50: #{tpu_custom_call.1} parent=1 // pred_check
      _
    $region51: #{tpu_custom_call.1} parent=1 // pred_check_branch
      %392 = sbr.rel (0) target = $region53
    $region52: #{tpu_custom_call.1} parent=1 // pred_region
      %393 = dma.done [#allocation4], 128
    $region53: #{tpu_custom_call.1} parent=1 // pred_fallthru
      _
    // Predicated region
    $region54: #{tpu_custom_call.1} parent=1 // pred_check
      _
    $region55: #{tpu_custom_call.1} parent=1 // pred_check_branch
      %395 = sbr.rel (0) target = $region57
    $region56: #{tpu_custom_call.1} parent=1 // pred_region
      %396 = dma.done [#allocation9], 128
    $region57: #{tpu_custom_call.1} parent=1 // pred_fallthru
      _
    %397 = vsyncpa [#allocation3], 1
    %398 = vsyncpa [#allocation6], 1
    %399 = vsyncpa [#allocation4], 1
    %400 = vsyncpa [#allocation9], 1

</llo_original>
